<compile_context>
chip_gen: v6e
topology: v6e:2x2x1
jax: 0.10.0
libtpu: 0.0.40
codegen_flags: <defaults>
</compile_context>

<pallas_src>
import math

import jax
import jax.numpy as jnp
from jax.experimental import pallas as pl
from jax.experimental.pallas import tpu as pltpu


NEG_INF = -1e30  # large finite negative: avoids inf-inf -> NaN in online softmax


def _round_up(v, m):
    return (v + m - 1) // m * m


def _make_kernel(block_q, block_kv):
    def kernel(q_ref, k_ref, v_ref, o_ref, m_scr, l_scr, acc_scr):
        qi = pl.program_id(1)
        ki = pl.program_id(2)
        n_kv = pl.num_programs(2)

        q0 = qi * block_q
        k0 = ki * block_kv
        q_hi = q0 + (block_q - 1)
        k_hi = k0 + (block_kv - 1)

        @pl.when(ki == 0)
        def _init():
            m_scr[...] = jnp.full(m_scr.shape, NEG_INF, dtype=m_scr.dtype)
            l_scr[...] = jnp.zeros(l_scr.shape, dtype=l_scr.dtype)
            acc_scr[...] = jnp.zeros(acc_scr.shape, dtype=acc_scr.dtype)

        def attend(apply_mask):
            k = k_ref[...]
            v = v_ref[...]
            # q @ k^T without an explicit transpose: contract the feature axes.
            # Operands stay in compute_dtype (bf16 fast path); accumulate in f32.
            s = jax.lax.dot_general(
                q_ref[...], k, (((1,), (1,)), ((), ())),
                preferred_element_type=jnp.float32)       # (block_q, block_kv) f32
            if apply_mask:
                row = q0 + jax.lax.broadcasted_iota(jnp.int32, s.shape, 0)
                col = k0 + jax.lax.broadcasted_iota(jnp.int32, s.shape, 1)
                s = jnp.where(col > row, NEG_INF, s)
            # Online softmax update (all statistics in f32).
            m_prev = m_scr[...]
            m_new = jnp.maximum(m_prev, jnp.max(s, axis=-1, keepdims=True))
            alpha = jnp.exp(m_prev - m_new)
            p = jnp.exp(s - m_new)
            l_scr[...] = alpha * l_scr[...] + jnp.sum(p, axis=-1, keepdims=True)
            acc_scr[...] = alpha * acc_scr[...] + jnp.dot(
                p.astype(v.dtype), v, preferred_element_type=jnp.float32)
            m_scr[...] = m_new

        # Tiles straddling the diagonal: apply the causal mask.
        @pl.when(jnp.logical_and(k0 <= q_hi, k_hi > q0))
        def _masked():
            attend(True)

        # Tiles fully at/below the diagonal: no mask work at all.
        @pl.when(k_hi <= q0)
        def _unmasked():
            attend(False)

        # Tiles fully above the diagonal (k0 > q_hi) are skipped entirely
        # (and their kv DMA is also skipped via the clamped index_map).

        @pl.when(ki == n_kv - 1)
        def _finalize():
            inv_l = pl.reciprocal(l_scr[...], approx=False)   # exact, off hot path
            o_ref[...] = (acc_scr[...] * inv_l).astype(o_ref.dtype)

    return kernel


def causal_attention(x, wq, wk, wv, *, block_t=256, compute_dtype=jnp.bfloat16):
    """x: (B, T, d_in); wq/wk/wv: (d_out, d_in) (PyTorch nn.Linear layout).

    Returns (B, T, d_out) = softmax(causal_mask(q k^T) / sqrt(d_out)) @ v,
    matching CausalAttention.forward in eval mode.
    """
    assert block_t % 8 == 0
    B, T, d_in = x.shape
    d_out = wq.shape[0]
    scale = 1.0 / math.sqrt(d_out)          # keys.shape[-1] ** 0.5 in the module

    # Q/K/V projections hoisted out of the flash kernel (done once, plain XLA GEMM).
    # The softmax scale is folded into W_query (a one-time O(d_in*d_out) weight op).
    q = x @ (wq * scale).T
    k = x @ wk.T
    v = x @ wv.T

    # Lane-dense padding: feature dim to multiple of 128, token dim to the tile.
    d_out_p = _round_up(d_out, 128)
    blk = min(block_t, _round_up(T, 8))
    T_p = _round_up(T, blk)
    n_t = T_p // blk
    # block_q == block_kv by construction: required for the NaN-safety /
    # padded-column arguments in the kernel comments above.

    def prep(a):
        a = jnp.pad(a, ((0, 0), (0, T_p - T), (0, d_out_p - d_out)))
        return a.astype(compute_dtype)

    qp, kp, vp = prep(q), prep(k), prep(v)

    kernel = _make_kernel(blk, blk)

    q_spec = pl.BlockSpec((pl.Squeezed(), blk, d_out_p),
                          lambda b, qi, ki: (b, qi, 0))
    # Clamp kv block index to the diagonal: above-diagonal grid steps repeat the
    # previous block index, so Pallas skips the (otherwise wasted) DMA.
    kv_spec = pl.BlockSpec((pl.Squeezed(), blk, d_out_p),
                           lambda b, qi, ki: (b, jnp.minimum(ki, qi), 0))

    out_p = pl.pallas_call(
        kernel,
        out_shape=jax.ShapeDtypeStruct((B, T_p, d_out_p), x.dtype),
        grid_spec=pltpu.PrefetchScalarGridSpec(
            num_scalar_prefetch=0,
            grid=(B, n_t, n_t),                 # kv (reduction) axis last
            in_specs=[q_spec, kv_spec, kv_spec],
            out_specs=pl.BlockSpec((pl.Squeezed(), blk, d_out_p),
                                   lambda b, qi, ki: (b, qi, 0)),
            scratch_shapes=[
                pltpu.VMEM((blk, 1), jnp.float32),         # running max m
                pltpu.VMEM((blk, 1), jnp.float32),         # running denom l
                pltpu.VMEM((blk, d_out_p), jnp.float32),   # output accumulator
            ],
        ),
        compiler_params=pltpu.CompilerParams(
            dimension_semantics=("parallel", "parallel", "arbitrary"),
            vmem_limit_bytes=32 * 1024 * 1024,   # large headroom; < v7x's 64 MiB
        ),
    )(qp, kp, vp)

    return out_p[:, :T, :d_out]


def causal_attention_ref(x, wq, wk, wv, compute_dtype=jnp.float32):
    """Plain-JAX reference mirroring the PyTorch forward (eval mode).

    compute_dtype mirrors the kernel's MXU-operand dtype so the bf16 fast path can
    be checked apples-to-apples; f32 reproduces the module math directly.
    """
    d_out = wq.shape[0]
    scale = 1.0 / math.sqrt(d_out)
    q = (x @ (wq * scale).T).astype(compute_dtype)
    k = (x @ wk.T).astype(compute_dtype)
    v = (x @ wv.T).astype(compute_dtype)
    s = jnp.einsum("btd,bsd->bts", q, k, preferred_element_type=jnp.float32)
    T = x.shape[1]
    mask = jnp.triu(jnp.ones((T, T), dtype=bool), k=1)
    s = jnp.where(mask[None], -jnp.inf, s)
    p = jax.nn.softmax(s, axis=-1)
    out = jnp.einsum("bts,bsd->btd", p.astype(compute_dtype), v,
                     preferred_element_type=jnp.float32)
    return out.astype(x.dtype)


def _run_check(key, B, T, D_IN, D_OUT, compute_dtype, atol, rtol):
    kx, kq, kk, kv = jax.random.split(key, 4)
    x = jax.random.normal(kx, (B, T, D_IN), dtype=jnp.float32)
    bound = 1.0 / math.sqrt(D_IN)   # nn.Linear-style U(-1/sqrt(d_in), 1/sqrt(d_in))
    wq = jax.random.uniform(kq, (D_OUT, D_IN), jnp.float32, -bound, bound)
    wk = jax.random.uniform(kk, (D_OUT, D_IN), jnp.float32, -bound, bound)
    wv = jax.random.uniform(kv, (D_OUT, D_IN), jnp.float32, -bound, bound)

    out = jax.block_until_ready(
        causal_attention(x, wq, wk, wv, compute_dtype=compute_dtype))
    ref = causal_attention_ref(x, wq, wk, wv, compute_dtype=compute_dtype)
    assert out.shape == (B, T, D_OUT)
    assert jnp.allclose(out, ref, atol=atol, rtol=rtol), \
        f"max abs diff {jnp.max(jnp.abs(out - ref))}"


if __name__ == "__main__":
    key = jax.random.PRNGKey(0)
    k1, k2, k3, k4 = jax.random.split(key, 4)

    # Small shape consistent with the module (single-tile path), f32 compute.
    _run_check(k1, B=2, T=8, D_IN=32, D_OUT=16,
               compute_dtype=jnp.float32, atol=1e-2, rtol=1e-2)
    # Longer sequence: multi-tile flash path, causal tile/DMA skipping, padding.
    _run_check(k2, B=2, T=384, D_IN=32, D_OUT=16,
               compute_dtype=jnp.float32, atol=1e-2, rtol=1e-2)
    # Same shapes on the bf16 MXU fast path (default compute_dtype).
    _run_check(k3, B=2, T=384, D_IN=32, D_OUT=16,
               compute_dtype=jnp.bfloat16, atol=2e-2, rtol=2e-2)
    # The spec's d_out=1 configuration (padded to a 128-lane feature tile).
    _run_check(k4, B=2, T=8, D_IN=32, D_OUT=1,
               compute_dtype=jnp.float32, atol=1e-2, rtol=1e-2)

    print("KERNEL_OK")
</pallas_src>

<mosaic_0001>
module attributes {stable_mosaic.version = 11 : i64} {
  func.func @kernel(%arg0: i32, %arg1: i32, %arg2: i32, %arg3: memref<1x8x128xf32, #tpu.memory_space<vmem>>, %arg4: memref<1x8x128xf32, #tpu.memory_space<vmem>>, %arg5: memref<1x8x128xf32, #tpu.memory_space<vmem>>, %arg6: memref<1x8x128xf32, #tpu.memory_space<vmem>>, %arg7: memref<8x1xf32, #tpu.memory_space<vmem>>, %arg8: memref<8x1xf32, #tpu.memory_space<vmem>>, %arg9: memref<8x128xf32, #tpu.memory_space<vmem>>) attributes {dimension_semantics = [#tpu.dimension_semantics<parallel>, #tpu.dimension_semantics<parallel>, #tpu.dimension_semantics<arbitrary>], iteration_bounds = array<i64: 2, 1, 1>, scalar_prefetch = 0 : i64, scratch_operands = 3 : i64, tpu.core_type = #tpu.core_type<tc>, window_params = [{transform_indices = @transform_0, window_bounds = array<i64: 1, 8, 128>}, {transform_indices = @transform_1, window_bounds = array<i64: 1, 8, 128>}, {transform_indices = @transform_2, window_bounds = array<i64: 1, 8, 128>}, {transform_indices = @transform_3, window_bounds = array<i64: 1, 8, 128>}]} {
    %c8_i32 = arith.constant 8 : i32
    %0 = arith.muli %arg1, %c8_i32 : i32
    %c8_i32_0 = arith.constant 8 : i32
    %1 = arith.muli %arg2, %c8_i32_0 : i32
    %c7_i32 = arith.constant 7 : i32
    %2 = arith.addi %0, %c7_i32 : i32
    %c7_i32_1 = arith.constant 7 : i32
    %3 = arith.addi %1, %c7_i32_1 : i32
    %c0_i32 = arith.constant 0 : i32
    %4 = arith.cmpi eq, %arg2, %c0_i32 : i32
    %5 = arith.extui %4 : i1 to i32
    %c0_i32_2 = arith.constant 0 : i32
    %6 = arith.cmpi ne, %5, %c0_i32_2 : i32
    scf.if %6 {
      %cst = arith.constant -1.000000e+30 : f32
      %18 = vector.broadcast %cst : f32 to vector<8x1xf32>
      %c0 = arith.constant 0 : index
      %c0_7 = arith.constant 0 : index
      %19 = vector.load %arg7[%c0, %c0_7] : memref<8x1xf32, #tpu.memory_space<vmem>>, vector<8x1xf32>
      tpu.vector_store %arg7[%c0, %c0_7], %18 {strides = array<i32>} : memref<8x1xf32, #tpu.memory_space<vmem>>, vector<8x1xf32>,
      %cst_8 = arith.constant 0.000000e+00 : f32
      %20 = vector.broadcast %cst_8 : f32 to vector<8x1xf32>
      %c0_9 = arith.constant 0 : index
      %c0_10 = arith.constant 0 : index
      %21 = vector.load %arg8[%c0_9, %c0_10] : memref<8x1xf32, #tpu.memory_space<vmem>>, vector<8x1xf32>
      tpu.vector_store %arg8[%c0_9, %c0_10], %20 {strides = array<i32>} : memref<8x1xf32, #tpu.memory_space<vmem>>, vector<8x1xf32>,
      %cst_11 = arith.constant 0.000000e+00 : f32
      %22 = vector.broadcast %cst_11 : f32 to vector<8x128xf32>
      %c0_12 = arith.constant 0 : index
      %c0_13 = arith.constant 0 : index
      %23 = vector.load %arg9[%c0_12, %c0_13] : memref<8x128xf32, #tpu.memory_space<vmem>>, vector<8x128xf32>
      tpu.vector_store %arg9[%c0_12, %c0_13], %22 {strides = array<i32>} : memref<8x128xf32, #tpu.memory_space<vmem>>, vector<8x128xf32>,
    } else {
    }
    %7 = arith.cmpi sle, %1, %2 : i32
    %8 = arith.cmpi sgt, %3, %0 : i32
    %9 = arith.andi %7, %8 : i1
    %10 = arith.extui %9 : i1 to i32
    %c0_i32_3 = arith.constant 0 : i32
    %11 = arith.cmpi ne, %10, %c0_i32_3 : i32
    scf.if %11 {
      %c0 = arith.constant 0 : index
      %c0_7 = arith.constant 0 : index
      %c0_8 = arith.constant 0 : index
      %18 = vector.load %arg4[%c0, %c0_7, %c0_8] : memref<1x8x128xf32, #tpu.memory_space<vmem>>, vector<1x8x128xf32>
      %19 = vector.shape_cast %18 : vector<1x8x128xf32> to vector<8x128xf32>
      %c0_9 = arith.constant 0 : index
      %c0_10 = arith.constant 0 : index
      %c0_11 = arith.constant 0 : index
      %20 = vector.load %arg5[%c0_9, %c0_10, %c0_11] : memref<1x8x128xf32, #tpu.memory_space<vmem>>, vector<1x8x128xf32>
      %21 = vector.shape_cast %20 : vector<1x8x128xf32> to vector<8x128xf32>
      %c0_12 = arith.constant 0 : index
      %c0_13 = arith.constant 0 : index
      %c0_14 = arith.constant 0 : index
      %22 = vector.load %arg3[%c0_12, %c0_13, %c0_14] : memref<1x8x128xf32, #tpu.memory_space<vmem>>, vector<1x8x128xf32>
      %23 = vector.shape_cast %22 : vector<1x8x128xf32> to vector<8x128xf32>
      %cst = arith.constant dense<0.000000e+00> : vector<8x8xf32>
      %24 = tpu.matmul %23, %19, %cst {dimension_numbers = #tpu.dot_dimension_numbers<[1], [1], [0], [0], [0, 0, 1, 0], [], []>} : vector<8x128xf32>, vector<8x128xf32>, vector<8x8xf32> -> vector<8x8xf32>
      %25 = tpu.iota {dimensions = array<i32: 0>} : vector<8x8xi32>
      %26 = vector.broadcast %0 : i32 to vector<8x8xi32>
      %27 = arith.addi %26, %25 : vector<8x8xi32>
      %28 = tpu.iota {dimensions = array<i32: 1>} : vector<8x8xi32>
      %29 = vector.broadcast %1 : i32 to vector<8x8xi32>
      %30 = arith.addi %29, %28 : vector<8x8xi32>
      %31 = arith.cmpi sgt, %30, %27 : vector<8x8xi32>
      %cst_15 = arith.constant -1.000000e+30 : f32
      %32 = vector.broadcast %cst_15 : f32 to vector<8x8xf32>
      %33 = arith.select %31, %32, %24 : vector<8x8xi1>, vector<8x8xf32>
      %c0_16 = arith.constant 0 : index
      %c0_17 = arith.constant 0 : index
      %34 = vector.load %arg7[%c0_16, %c0_17] : memref<8x1xf32, #tpu.memory_space<vmem>>, vector<8x1xf32>
      %cst_18 = arith.constant dense<0xFF800000> : vector<8xf32>
      %35 = vector.multi_reduction <maximumf>, %33, %cst_18 [1] : vector<8x8xf32> to vector<8xf32>
      %36 = vector.shape_cast %35 : vector<8xf32> to vector<8x1xf32>
      %37 = arith.maximumf %34, %36 : vector<8x1xf32>
      %38 = arith.subf %34, %37 : vector<8x1xf32>
      %39 = math.exp %38 : vector<8x1xf32>
      %40 = vector.broadcast %37 : vector<8x1xf32> to vector<8x8xf32>
      %41 = arith.subf %33, %40 : vector<8x8xf32>
      %42 = math.exp %41 : vector<8x8xf32>
      %c0_19 = arith.constant 0 : index
      %c0_20 = arith.constant 0 : index
      %43 = vector.load %arg8[%c0_19, %c0_20] : memref<8x1xf32, #tpu.memory_space<vmem>>, vector<8x1xf32>
      %44 = arith.mulf %39, %43 : vector<8x1xf32>
      %cst_21 = arith.constant dense<0.000000e+00> : vector<8xf32>
      %45 = vector.multi_reduction <add>, %42, %cst_21 [1] : vector<8x8xf32> to vector<8xf32>
      %46 = vector.shape_cast %45 : vector<8xf32> to vector<8x1xf32>
      %47 = arith.addf %44, %46 : vector<8x1xf32>
      %c0_22 = arith.constant 0 : index
      %c0_23 = arith.constant 0 : index
      %48 = vector.load %arg8[%c0_22, %c0_23] : memref<8x1xf32, #tpu.memory_space<vmem>>, vector<8x1xf32>
      tpu.vector_store %arg8[%c0_22, %c0_23], %47 {strides = array<i32>} : memref<8x1xf32, #tpu.memory_space<vmem>>, vector<8x1xf32>,
      %c0_24 = arith.constant 0 : index
      %c0_25 = arith.constant 0 : index
      %49 = vector.load %arg9[%c0_24, %c0_25] : memref<8x128xf32, #tpu.memory_space<vmem>>, vector<8x128xf32>
      %50 = vector.broadcast %39 : vector<8x1xf32> to vector<8x128xf32>
      %51 = arith.mulf %50, %49 : vector<8x128xf32>
      %cst_26 = arith.constant dense<0.000000e+00> : vector<8x128xf32>
      %52 = tpu.matmul %42, %21, %cst_26 {dimension_numbers = #tpu.dot_dimension_numbers<[1], [0], [0], [1], [0, 0, 1, 1], [], []>} : vector<8x8xf32>, vector<8x128xf32>, vector<8x128xf32> -> vector<8x128xf32>
      %53 = arith.addf %51, %52 : vector<8x128xf32>
      %c0_27 = arith.constant 0 : index
      %c0_28 = arith.constant 0 : index
      %54 = vector.load %arg9[%c0_27, %c0_28] : memref<8x128xf32, #tpu.memory_space<vmem>>, vector<8x128xf32>
      tpu.vector_store %arg9[%c0_27, %c0_28], %53 {strides = array<i32>} : memref<8x128xf32, #tpu.memory_space<vmem>>, vector<8x128xf32>,
      %c0_29 = arith.constant 0 : index
      %c0_30 = arith.constant 0 : index
      %55 = vector.load %arg7[%c0_29, %c0_30] : memref<8x1xf32, #tpu.memory_space<vmem>>, vector<8x1xf32>
      tpu.vector_store %arg7[%c0_29, %c0_30], %37 {strides = array<i32>} : memref<8x1xf32, #tpu.memory_space<vmem>>, vector<8x1xf32>,
    } else {
    }
    %12 = arith.cmpi sle, %3, %0 : i32
    %13 = arith.extui %12 : i1 to i32
    %c0_i32_4 = arith.constant 0 : i32
    %14 = arith.cmpi ne, %13, %c0_i32_4 : i32
    scf.if %14 {
      %c0 = arith.constant 0 : index
      %c0_7 = arith.constant 0 : index
      %c0_8 = arith.constant 0 : index
      %18 = vector.load %arg4[%c0, %c0_7, %c0_8] : memref<1x8x128xf32, #tpu.memory_space<vmem>>, vector<1x8x128xf32>
      %19 = vector.shape_cast %18 : vector<1x8x128xf32> to vector<8x128xf32>
      %c0_9 = arith.constant 0 : index
      %c0_10 = arith.constant 0 : index
      %c0_11 = arith.constant 0 : index
      %20 = vector.load %arg5[%c0_9, %c0_10, %c0_11] : memref<1x8x128xf32, #tpu.memory_space<vmem>>, vector<1x8x128xf32>
      %21 = vector.shape_cast %20 : vector<1x8x128xf32> to vector<8x128xf32>
      %c0_12 = arith.constant 0 : index
      %c0_13 = arith.constant 0 : index
      %c0_14 = arith.constant 0 : index
      %22 = vector.load %arg3[%c0_12, %c0_13, %c0_14] : memref<1x8x128xf32, #tpu.memory_space<vmem>>, vector<1x8x128xf32>
      %23 = vector.shape_cast %22 : vector<1x8x128xf32> to vector<8x128xf32>
      %cst = arith.constant dense<0.000000e+00> : vector<8x8xf32>
      %24 = tpu.matmul %23, %19, %cst {dimension_numbers = #tpu.dot_dimension_numbers<[1], [1], [0], [0], [0, 0, 1, 0], [], []>} : vector<8x128xf32>, vector<8x128xf32>, vector<8x8xf32> -> vector<8x8xf32>
      %c0_15 = arith.constant 0 : index
      %c0_16 = arith.constant 0 : index
      %25 = vector.load %arg7[%c0_15, %c0_16] : memref<8x1xf32, #tpu.memory_space<vmem>>, vector<8x1xf32>
      %cst_17 = arith.constant dense<0xFF800000> : vector<8xf32>
      %26 = vector.multi_reduction <maximumf>, %24, %cst_17 [1] : vector<8x8xf32> to vector<8xf32>
      %27 = vector.shape_cast %26 : vector<8xf32> to vector<8x1xf32>
      %28 = arith.maximumf %25, %27 : vector<8x1xf32>
      %29 = arith.subf %25, %28 : vector<8x1xf32>
      %30 = math.exp %29 : vector<8x1xf32>
      %31 = vector.broadcast %28 : vector<8x1xf32> to vector<8x8xf32>
      %32 = arith.subf %24, %31 : vector<8x8xf32>
      %33 = math.exp %32 : vector<8x8xf32>
      %c0_18 = arith.constant 0 : index
      %c0_19 = arith.constant 0 : index
      %34 = vector.load %arg8[%c0_18, %c0_19] : memref<8x1xf32, #tpu.memory_space<vmem>>, vector<8x1xf32>
      %35 = arith.mulf %30, %34 : vector<8x1xf32>
      %cst_20 = arith.constant dense<0.000000e+00> : vector<8xf32>
      %36 = vector.multi_reduction <add>, %33, %cst_20 [1] : vector<8x8xf32> to vector<8xf32>
      %37 = vector.shape_cast %36 : vector<8xf32> to vector<8x1xf32>
      %38 = arith.addf %35, %37 : vector<8x1xf32>
      %c0_21 = arith.constant 0 : index
      %c0_22 = arith.constant 0 : index
      %39 = vector.load %arg8[%c0_21, %c0_22] : memref<8x1xf32, #tpu.memory_space<vmem>>, vector<8x1xf32>
      tpu.vector_store %arg8[%c0_21, %c0_22], %38 {strides = array<i32>} : memref<8x1xf32, #tpu.memory_space<vmem>>, vector<8x1xf32>,
      %c0_23 = arith.constant 0 : index
      %c0_24 = arith.constant 0 : index
      %40 = vector.load %arg9[%c0_23, %c0_24] : memref<8x128xf32, #tpu.memory_space<vmem>>, vector<8x128xf32>
      %41 = vector.broadcast %30 : vector<8x1xf32> to vector<8x128xf32>
      %42 = arith.mulf %41, %40 : vector<8x128xf32>
      %cst_25 = arith.constant dense<0.000000e+00> : vector<8x128xf32>
      %43 = tpu.matmul %33, %21, %cst_25 {dimension_numbers = #tpu.dot_dimension_numbers<[1], [0], [0], [1], [0, 0, 1, 1], [], []>} : vector<8x8xf32>, vector<8x128xf32>, vector<8x128xf32> -> vector<8x128xf32>
      %44 = arith.addf %42, %43 : vector<8x128xf32>
      %c0_26 = arith.constant 0 : index
      %c0_27 = arith.constant 0 : index
      %45 = vector.load %arg9[%c0_26, %c0_27] : memref<8x128xf32, #tpu.memory_space<vmem>>, vector<8x128xf32>
      tpu.vector_store %arg9[%c0_26, %c0_27], %44 {strides = array<i32>} : memref<8x128xf32, #tpu.memory_space<vmem>>, vector<8x128xf32>,
      %c0_28 = arith.constant 0 : index
      %c0_29 = arith.constant 0 : index
      %46 = vector.load %arg7[%c0_28, %c0_29] : memref<8x1xf32, #tpu.memory_space<vmem>>, vector<8x1xf32>
      tpu.vector_store %arg7[%c0_28, %c0_29], %28 {strides = array<i32>} : memref<8x1xf32, #tpu.memory_space<vmem>>, vector<8x1xf32>,
    } else {
    }
    %c0_i32_5 = arith.constant 0 : i32
    %15 = arith.cmpi eq, %arg2, %c0_i32_5 : i32
    %16 = arith.extui %15 : i1 to i32
    %c0_i32_6 = arith.constant 0 : i32
    %17 = arith.cmpi ne, %16, %c0_i32_6 : i32
    scf.if %17 {
      %c0 = arith.constant 0 : index
      %c0_7 = arith.constant 0 : index
      %18 = vector.load %arg8[%c0, %c0_7] : memref<8x1xf32, #tpu.memory_space<vmem>>, vector<8x1xf32>
      %19 = tpu.reciprocal %18 : vector<8x1xf32> -> vector<8x1xf32>
      %c0_8 = arith.constant 0 : index
      %c0_9 = arith.constant 0 : index
      %20 = vector.load %arg9[%c0_8, %c0_9] : memref<8x128xf32, #tpu.memory_space<vmem>>, vector<8x128xf32>
      %21 = vector.broadcast %19 : vector<8x1xf32> to vector<8x128xf32>
      %22 = arith.mulf %20, %21 : vector<8x128xf32>
      %c0_10 = arith.constant 0 : index
      %c0_11 = arith.constant 0 : index
      %c0_12 = arith.constant 0 : index
      %23 = vector.load %arg6[%c0_10, %c0_11, %c0_12] : memref<1x8x128xf32, #tpu.memory_space<vmem>>, vector<1x8x128xf32>
      %24 = vector.shape_cast %23 : vector<1x8x128xf32> to vector<8x128xf32>
      %25 = vector.shape_cast %22 : vector<8x128xf32> to vector<1x8x128xf32>
      tpu.vector_store %arg6[%c0_10, %c0_11, %c0_12], %25 {strides = array<i32>} : memref<1x8x128xf32, #tpu.memory_space<vmem>>, vector<1x8x128xf32>,
    } else {
    }
    return
  }
  func.func @transform_0(%arg0: i32, %arg1: i32, %arg2: i32) -> (i32, i32, i32) {
    %c0_i32 = arith.constant 0 : i32
    %c0_i32_0 = arith.constant 0 : i32
    return %arg0, %arg1, %c0_i32 : i32, i32, i32
  }
  func.func @transform_1(%arg0: i32, %arg1: i32, %arg2: i32) -> (i32, i32, i32) {
    %0 = arith.minsi %arg2, %arg1 : i32
    %c0_i32 = arith.constant 0 : i32
    %c0_i32_0 = arith.constant 0 : i32
    return %arg0, %0, %c0_i32 : i32, i32, i32
  }
  func.func @transform_2(%arg0: i32, %arg1: i32, %arg2: i32) -> (i32, i32, i32) {
    %0 = arith.minsi %arg2, %arg1 : i32
    %c0_i32 = arith.constant 0 : i32
    %c0_i32_0 = arith.constant 0 : i32
    return %arg0, %0, %c0_i32 : i32, i32, i32
  }
  func.func @transform_3(%arg0: i32, %arg1: i32, %arg2: i32) -> (i32, i32, i32) {
    %c0_i32 = arith.constant 0 : i32
    %c0_i32_0 = arith.constant 0 : i32
    return %arg0, %arg1, %c0_i32 : i32, i32, i32
  }
}

</mosaic_0001>

<llo_original>
// kernel: tpu_custom_call.1
$region0: #{tpu_custom_call.1}
  #allocation0 [shape = 'u32[]', space=smem, size = 0x4, offset = 0x4, fixed_abs, tag = 'smem constant byte address 0x4 - core index']
  #allocation1 [shape = 'u32[144,128]{1,0:T(1,128)}', space=vmem, size = 0x12000, scoped, tag = 'internal scratch']
  #allocation2 [shape = 'f32[8,1]{1,0:T(8,128)}', space=vmem, size = 0x1000, scoped, tag = 'scratch operand']
  #allocation3 [shape = 'f32[8,1]{1,0:T(8,128)}', space=vmem, size = 0x1000, scoped, tag = 'scratch operand']
  #allocation4 [shape = 'f32[8,128]{1,0:T(8,128)}', space=vmem, size = 0x1000, scoped, tag = 'scratch operand']
  %s0 = inlined_call_operand.hbm [shape: f32[2,8,128], index: 0, kind: input, shape index: {}]
  %s1 = inlined_call_operand.hbm [shape: f32[2,8,128], index: 1, kind: input, shape index: {}]
  %s2 = inlined_call_operand.hbm [shape: f32[2,8,128], index: 2, kind: input, shape index: {}]
  %s3 = inlined_call_operand.hbm [shape: f32[2,8,128], index: 3, kind: output, shape index: {}]
  %s4 = sld [smem:[#allocation0]]
  $region73: #{tpu_custom_call.1} parent=0
    _
  %s6 = ssub.s32 1, %s4
  %s7 = scalar_select 0, %s6, %s4
  $region1: #{tpu_custom_call.1} parent=0
    #allocation5 [shape = 'u8[8192]{0}', space=vmem, size = 0x2000, scoped, tag = 'input window, operand 0']
    #allocation6 [shape = 's32[2]{0}', space=sflag, size = 0x8, scoped, tag = 'scoped memory for tpu_custom_call.1']
    #allocation7 [shape = 's32[2]{0}', space=sflag, size = 0x8, scoped, tag = 'scoped memory for tpu_custom_call.1']
    #allocation8 [shape = 'u8[8192]{0}', space=vmem, size = 0x2000, scoped, tag = 'input window, operand 1']
    #allocation9 [shape = 's32[2]{0}', space=sflag, size = 0x8, scoped, tag = 'scoped memory for tpu_custom_call.1']
    #allocation10 [shape = 'u8[8192]{0}', space=vmem, size = 0x2000, scoped, tag = 'input window, operand 2']
    #allocation11 [shape = 'u8[8192]{0}', space=vmem, size = 0x2000, scoped, tag = 'output window, operand 0']
    %8 = vsyncpa [#allocation6], 0
    %s9 = scalar_lea.sflag [#allocation6], 1
    %10 = vsyncpa %s9, 0
    %11 = vsyncpa [#allocation9], 0
    %s12 = scalar_lea.sflag [#allocation9], 1
    %13 = vsyncpa %s12, 0
    %14 = vsyncpa [#allocation7], 0
    %s15 = scalar_lea.sflag [#allocation7], 1
    %16 = vsyncpa %s15, 0
    loop: start=0, step=1, limit=4
    $region2: #{tpu_custom_call.1} parent=1 // loop_pre_header
      _
    $region3: #{tpu_custom_call.1} parent=1 // loop_header
      %s18 = sphi 0, %s22
      %p19 = scmp.ge.s32.totalorder %s18, 4
      %s25 = sphi 0, %s44
      %s26 = sphi 0, %s40
      %s27 = sphi 0, %s36
      %s28 = sphi 0, %s25
      %s29 = sphi 0, %s26
      %s30 = sphi 0, %s27
      %s31 = sphi 0, %s28
      %s32 = sphi 0, %s29
      %s33 = sphi 0, %s30
      %s49 = sphi 0, %s51
      %s52 = sphi 0, %s49
      %s53 = sphi 0, %s52
      %s69 = sphi 0, %s53
      %s81 = sphi 0, %s83
      %s84 = sphi 0, %s81
      %s85 = sphi 0, %s84
      %s101 = sphi 0, %s85
      %s113 = sphi 0, %s115
      %s116 = sphi 0, %s113
      %s117 = sphi 0, %s116
      %s133 = sphi 0, %s117
      %s141 = sphi 0, %s143
      %s144 = sphi 0, %s141
      %s145 = sphi 0, %s144
      %s161 = sphi 0, %s145
    $region4: #{tpu_custom_call.1} parent=1 // loop_header_branch
      %21 = sbr.rel (%p19) target = $region8
    $region5: #{tpu_custom_call.1} parent=1 // loop_body
      %s23 = ssub.s32 %s18, 1
      %s24 = ssub.s32 %s18, 2
      %s34 = sadd.s32 1, %s27
      %p35 = scmp.ge.s32.totalorder %s34, 1
      %s36 = scalar_select %p35, 0, %s34
      %s37 = sadd.s32 1, %s26
      %s38 = scalar_select %p35, %s37, %s26
      %p39 = scmp.ge.s32.totalorder %s38, 1
      %s40 = scalar_select %p39, 0, %s38
      %s41 = sadd.s32 1, %s25
      %s42 = scalar_select %p39, %s41, %s25
      %p43 = scmp.ge.s32.totalorder %s42, 2
      %s44 = scalar_select %p43, 0, %s42
      %s45 = ssub.s32 %s25, %s44
      %s46 = ssub.s32 %s26, %s40
      %s47 = sor.u32 %s45, %s46
      %p48 = scmp.eq.s32.totalorder %s47, 0
      %s50 = sadd.s32 %s49, 1
      %s51 = scalar_select %p48, %s49, %s50
      %p54 = pneg %p48
      %p55 = scmp.eq.s32.totalorder %s18, 1
      %p56 = por %p54, %p55
      %p57 = scmp.ne.s32.totalorder %s49, %s52
      %p58 = scmp.eq.s32.totalorder %s18, 0
      %p59 = por %p57, %p58
      %p60 = scmp.ne.s32.totalorder %s49, %s52
      %p61 = scmp.eq.s32.totalorder %s23, 1
      %p62 = por %p60, %p61
      %p63 = scmp.ne.s32.totalorder %s52, %s53
      %p64 = scmp.eq.s32.totalorder %s23, 0
      %p65 = por %p63, %p64
      %p66 = scmp.ne.s32.totalorder %s52, %s53
      %p67 = scmp.eq.s32.totalorder %s24, 1
      %p68 = por %p66, %p67
      %p70 = scmp.ne.s32.totalorder %s53, %s69
      %p71 = scmp.eq.s32.totalorder %s24, 0
      %p72 = por %p70, %p71
      %p73 = scmp.lt.s32.totalorder %s27, %s26
      %s74 = scalar_select %p73, %s27, %s26
      %p75 = scmp.lt.s32.totalorder %s36, %s40
      %s76 = scalar_select %p75, %s36, %s40
      %s77 = ssub.s32 %s25, %s44
      %s78 = ssub.s32 %s74, %s76
      %s79 = sor.u32 %s77, %s78
      %p80 = scmp.eq.s32.totalorder %s79, 0
      %s82 = sadd.s32 %s81, 1
      %s83 = scalar_select %p80, %s81, %s82
      %p86 = pneg %p80
      %p87 = scmp.eq.s32.totalorder %s18, 1
      %p88 = por %p86, %p87
      %p89 = scmp.ne.s32.totalorder %s81, %s84
      %p90 = scmp.eq.s32.totalorder %s18, 0
      %p91 = por %p89, %p90
      %p92 = scmp.ne.s32.totalorder %s81, %s84
      %p93 = scmp.eq.s32.totalorder %s23, 1
      %p94 = por %p92, %p93
      %p95 = scmp.ne.s32.totalorder %s84, %s85
      %p96 = scmp.eq.s32.totalorder %s23, 0
      %p97 = por %p95, %p96
      %p98 = scmp.ne.s32.totalorder %s84, %s85
      %p99 = scmp.eq.s32.totalorder %s24, 1
      %p100 = por %p98, %p99
      %p102 = scmp.ne.s32.totalorder %s85, %s101
      %p103 = scmp.eq.s32.totalorder %s24, 0
      %p104 = por %p102, %p103
      %p105 = scmp.lt.s32.totalorder %s27, %s26
      %s106 = scalar_select %p105, %s27, %s26
      %p107 = scmp.lt.s32.totalorder %s36, %s40
      %s108 = scalar_select %p107, %s36, %s40
      %s109 = ssub.s32 %s25, %s44
      %s110 = ssub.s32 %s106, %s108
      %s111 = sor.u32 %s109, %s110
      %p112 = scmp.eq.s32.totalorder %s111, 0
      %s114 = sadd.s32 %s113, 1
      %s115 = scalar_select %p112, %s113, %s114
      %p118 = pneg %p112
      %p119 = scmp.eq.s32.totalorder %s18, 1
      %p120 = por %p118, %p119
      %p121 = scmp.ne.s32.totalorder %s113, %s116
      %p122 = scmp.eq.s32.totalorder %s18, 0
      %p123 = por %p121, %p122
      %p124 = scmp.ne.s32.totalorder %s113, %s116
      %p125 = scmp.eq.s32.totalorder %s23, 1
      %p126 = por %p124, %p125
      %p127 = scmp.ne.s32.totalorder %s116, %s117
      %p128 = scmp.eq.s32.totalorder %s23, 0
      %p129 = por %p127, %p128
      %p130 = scmp.ne.s32.totalorder %s116, %s117
      %p131 = scmp.eq.s32.totalorder %s24, 1
      %p132 = por %p130, %p131
      %p134 = scmp.ne.s32.totalorder %s117, %s133
      %p135 = scmp.eq.s32.totalorder %s24, 0
      %p136 = por %p134, %p135
      %s137 = ssub.s32 %s25, %s44
      %s138 = ssub.s32 %s26, %s40
      %s139 = sor.u32 %s137, %s138
      %p140 = scmp.eq.s32.totalorder %s139, 0
      %s142 = sadd.s32 %s141, 1
      %s143 = scalar_select %p140, %s141, %s142
      %p146 = pneg %p140
      %p147 = scmp.eq.s32.totalorder %s18, 1
      %p148 = por %p146, %p147
      %p149 = scmp.ne.s32.totalorder %s141, %s144
      %p150 = scmp.eq.s32.totalorder %s18, 0
      %p151 = por %p149, %p150
      %p152 = scmp.ne.s32.totalorder %s141, %s144
      %p153 = scmp.eq.s32.totalorder %s23, 1
      %p154 = por %p152, %p153
      %p155 = scmp.ne.s32.totalorder %s144, %s145
      %p156 = scmp.eq.s32.totalorder %s23, 0
      %p157 = por %p155, %p156
      %p158 = scmp.ne.s32.totalorder %s144, %s145
      %p159 = scmp.eq.s32.totalorder %s24, 1
      %p160 = por %p158, %p159
      %p162 = scmp.ne.s32.totalorder %s145, %s161
      %p163 = scmp.eq.s32.totalorder %s24, 0
      %p164 = por %p162, %p163
      %p165 = scmp.le.s32.totalorder 1, %s18
      %p166 = scmp.lt.s32.totalorder %s18, 3
      %p167 = pnand %p165, %p166
      %p168 = pneg %p167
      // Predicated region
      $region9: #{tpu_custom_call.1} parent=5 // pred_check
        _
      $region10: #{tpu_custom_call.1} parent=5 // pred_check_branch
        %170 = sbr.rel (%p167) target = $region12
      $region11: #{tpu_custom_call.1} parent=5 // pred_region
        %s171 = ssub.s32 %s18, 1
      $region12: #{tpu_custom_call.1} parent=5 // pred_fallthru
        _
      %p172 = scmp.lt.s32.totalorder %s18, 2
      // Predicated region
      $region13: #{tpu_custom_call.1} parent=5 // pred_check
        %p173 = pneg %p172
      $region14: #{tpu_custom_call.1} parent=5 // pred_check_branch
        %175 = sbr.rel (%p173) target = $region16
      $region15: #{tpu_custom_call.1} parent=5 // pred_region
        // Predicated region
        $region17: #{tpu_custom_call.1} parent=15 // pred_check
          %p176 = pneg %p59
        $region18: #{tpu_custom_call.1} parent=15 // pred_check_branch
          %178 = sbr.rel (%p176) target = $region20
        $region19: #{tpu_custom_call.1} parent=15 // pred_region
          %s179 = sand.u32 %s49, 1
          %s180 = scalar_lea.sflag [#allocation6], %s179
          %s181 = sand.u32 %s49, 1
          %s182 = smul.addr %s181, 8
          %s183 = scalar_lea.vmem [#allocation5], %s182
          %s185 = ssub.s32 128, 128
          %186 = vsyncadd %s180, %s185
          %s187 = sadd.s32 %s26, %s25
          %s188 = smul.addr %s187, 128
          %s189 = scalar_lea.hbm %s0, %s188
          %s191 = sshll.u32 %s183, 4
          %s192 = int_to_ptr.vmem [resolvable:$true] %s191
          %194 = dma.hbm_to_vmem [thread:$0]  %s189, 128, %s192, %s180
        $region20: #{tpu_custom_call.1} parent=15 // pred_fallthru
          _
        // Predicated region
        $region21: #{tpu_custom_call.1} parent=15 // pred_check
          %p195 = pneg %p91
        $region22: #{tpu_custom_call.1} parent=15 // pred_check_branch
          %197 = sbr.rel (%p195) target = $region24
        $region23: #{tpu_custom_call.1} parent=15 // pred_region
          %s198 = sand.u32 %s18, 1
          %s199 = scalar_lea.sflag [#allocation9], %s198
          %s200 = sand.u32 %s81, 1
          %s201 = smul.addr %s200, 8
          %s202 = scalar_lea.vmem [#allocation8], %s201
          %p203 = scmp.lt.s32.totalorder %s27, %s26
          %s204 = scalar_select %p203, %s27, %s26
          %s206 = ssub.s32 128, 128
          %207 = vsyncadd %s199, %s206
          %s208 = sadd.s32 %s204, %s25
          %s209 = smul.addr %s208, 128
          %s210 = scalar_lea.hbm %s1, %s209
          %s212 = sshll.u32 %s202, 4
          %s213 = int_to_ptr.vmem [resolvable:$true] %s212
          %215 = dma.hbm_to_vmem [thread:$0]  %s210, 128, %s213, %s199
        $region24: #{tpu_custom_call.1} parent=15 // pred_fallthru
          _
        // Predicated region
        $region25: #{tpu_custom_call.1} parent=15 // pred_check
          %p216 = pneg %p123
        $region26: #{tpu_custom_call.1} parent=15 // pred_check_branch
          %218 = sbr.rel (%p216) target = $region28
        $region27: #{tpu_custom_call.1} parent=15 // pred_region
          %s219 = sand.u32 %s18, 1
          %s220 = scalar_lea.sflag [#allocation9], %s219
          %s221 = sand.u32 %s113, 1
          %s222 = smul.addr %s221, 8
          %s223 = scalar_lea.vmem [#allocation10], %s222
          %p224 = scmp.lt.s32.totalorder %s27, %s26
          %s225 = scalar_select %p224, %s27, %s26
          %s227 = ssub.s32 128, 128
          %228 = vsyncadd %s220, %s227
          %s229 = sadd.s32 %s225, %s25
          %s230 = smul.addr %s229, 128
          %s231 = scalar_lea.hbm %s2, %s230
          %s233 = sshll.u32 %s223, 4
          %s234 = int_to_ptr.vmem [resolvable:$true] %s233
          %236 = dma.hbm_to_vmem [thread:$0]  %s231, 128, %s234, %s220
        $region28: #{tpu_custom_call.1} parent=15 // pred_fallthru
          _
      $region16: #{tpu_custom_call.1} parent=5 // pred_fallthru
        _
      %p237 = scmp.le.s32.totalorder 1, %s18
      %p238 = scmp.lt.s32.totalorder %s18, 3
      %p239 = pnand %p237, %p238
      %p240 = pneg %p239
      // Predicated region
      $region29: #{tpu_custom_call.1} parent=5 // pred_check
        _
      $region30: #{tpu_custom_call.1} parent=5 // pred_check_branch
        %242 = sbr.rel (%p239) target = $region32
      $region31: #{tpu_custom_call.1} parent=5 // pred_region
        %s243 = ssub.s32 %s18, 1
        %s244 = sand.u32 %s52, 1
        %s245 = scalar_lea.sflag [#allocation6], %s244
        %s246 = sand.u32 %s52, 1
        %s247 = smul.addr %s246, 8
        %s248 = scalar_lea.vmem [#allocation5], %s247
        // Predicated region
        $region33: #{tpu_custom_call.1} parent=31 // pred_check
          %p249 = pneg %p65
        $region34: #{tpu_custom_call.1} parent=31 // pred_check_branch
          %251 = sbr.rel (%p249) target = $region36
        $region35: #{tpu_custom_call.1} parent=31 // pred_region
          %252 = dma.done %s245, 128
        $region36: #{tpu_custom_call.1} parent=31 // pred_fallthru
          _
        %s253 = sand.u32 %s23, 1
        %s254 = scalar_lea.sflag [#allocation9], %s253
        %s255 = sand.u32 %s84, 1
        %s256 = smul.addr %s255, 8
        %s257 = scalar_lea.vmem [#allocation8], %s256
        // Predicated region
        $region37: #{tpu_custom_call.1} parent=31 // pred_check
          %p258 = pneg %p97
        $region38: #{tpu_custom_call.1} parent=31 // pred_check_branch
          %260 = sbr.rel (%p258) target = $region40
        $region39: #{tpu_custom_call.1} parent=31 // pred_region
          %261 = dma.done %s254, 128
        $region40: #{tpu_custom_call.1} parent=31 // pred_fallthru
          _
        %s262 = sand.u32 %s23, 1
        %s263 = scalar_lea.sflag [#allocation9], %s262
        %s264 = sand.u32 %s116, 1
        %s265 = smul.addr %s264, 8
        %s266 = scalar_lea.vmem [#allocation10], %s265
        // Predicated region
        $region41: #{tpu_custom_call.1} parent=31 // pred_check
          %p267 = pneg %p129
        $region42: #{tpu_custom_call.1} parent=31 // pred_check_branch
          %269 = sbr.rel (%p267) target = $region44
        $region43: #{tpu_custom_call.1} parent=31 // pred_region
          %270 = dma.done %s263, 128
        $region44: #{tpu_custom_call.1} parent=31 // pred_fallthru
          _
        %s271 = sand.u32 %s52, 1
        %s272 = scalar_lea.sflag [#allocation6], %s271
        %s273 = sand.u32 %s52, 1
        %s274 = smul.addr %s273, 8
        %s275 = scalar_lea.vmem [#allocation5], %s274
        %p276 = pneg %p65
        %p277 = pneg %p62
        %s278 = sand.u32 %s23, 1
        %s279 = scalar_lea.sflag [#allocation9], %s278
        %s280 = sand.u32 %s84, 1
        %s281 = smul.addr %s280, 8
        %s282 = scalar_lea.vmem [#allocation8], %s281
        %p283 = pneg %p97
        %p284 = pneg %p94
        %s285 = sand.u32 %s23, 1
        %s286 = scalar_lea.sflag [#allocation9], %s285
        %s287 = sand.u32 %s116, 1
        %s288 = smul.addr %s287, 8
        %s289 = scalar_lea.vmem [#allocation10], %s288
        %p290 = pneg %p129
        %p291 = pneg %p126
        %p292 = pneg %p157
        %p293 = pneg %p154
        %s294 = sand.u32 %s144, 1
        %s295 = scalar_lea.sflag [#allocation7], %s294
        %s296 = sand.u32 %s144, 1
        %s297 = smul.addr %s296, 8
        %s298 = scalar_lea.vmem [#allocation11], %s297
        %p299 = scmp.lt.s32.totalorder %s30, %s29
        %s300 = scalar_select %p299, %s30, %s29
        %p301 = scmp.lt.s32.totalorder %s30, %s29
        %s302 = scalar_select %p301, %s30, %s29
        %s303 = smul.u32 %s29, 8
        %s304 = smul.u32 %s30, 8
        %s305 = sadd.s32 %s303, 7
        %s306 = sadd.s32 %s304, 7
        %p307 = scmp.eq.s32.totalorder %s30, 0
        // Predicated region
        $region45: #{tpu_custom_call.1} parent=31 // pred_check
          %p308 = pneg %p307
        $region46: #{tpu_custom_call.1} parent=31 // pred_check_branch
          %310 = sbr.rel (%p308) target = $region48
        $region47: #{tpu_custom_call.1} parent=31 // pred_region
          %vm311 = vcmask 7168
          %312 = vst.msk [vmem:[#allocation2] sm:$0xff] %vm311, -1e+30
          %313 = vst.msk [vmem:[#allocation3] sm:$0xff] %vm311, 0.0
          %314 = vst [vmem:[#allocation4] sm:$0xff] 0.0
        $region48: #{tpu_custom_call.1} parent=31 // pred_fallthru
          _
        %p315 = scmp.le.s32.totalorder %s304, %s305
        %p316 = scmp.gt.s32.totalorder %s306, %s303
        %p317 = pnand %p315, %p316
        %p318 = pneg %p317
        // Predicated region
        $region49: #{tpu_custom_call.1} parent=31 // pred_check
          _
        $region50: #{tpu_custom_call.1} parent=31 // pred_check_branch
          %320 = sbr.rel (%p317) target = $region52
        $region51: #{tpu_custom_call.1} parent=31 // pred_region
          %v321 = vld [vmem:[%s257] sm:$0xff]
          %v322 = vld [vmem:[%s266] sm:$0xff]
          %v323 = vld [vmem:[%s248] sm:$0xff]
          %324 = vmatprep.subr.mxu0 0.0
          %325 = vmatpush1.xpose.msra.mxu0 0.0
          %326 = vmatprep.subr.mxu0 0.0
          %327 = vmatpush1.xpose.msra.mxu0 0.0
          %328 = vmatprep.subr.mxu0 0.0
          %329 = vmatpush1.xpose.msra.mxu0 0.0
          %330 = vmatprep.subr.mxu0 0.0
          %331 = vmatpush1.xpose.msra.mxu0 0.0
          %332 = vmatprep.subr.mxu0 0.0
          %333 = vmatpush1.xpose.msra.mxu0 0.0
          %334 = vmatprep.subr.mxu0 0.0
          %335 = vmatpush1.xpose.msra.mxu0 0.0
          %336 = vmatprep.subr.mxu0 0.0
          %337 = vmatpush1.xpose.msra.mxu0 0.0
          %338 = vmatprep.subr.mxu0 0.0
          %339 = vmatpush1.xpose.msra.mxu0 0.0
          %340 = vmatprep.subr.mxu0 0.0
          %341 = vmatpush1.xpose.msra.mxu0 0.0
          %342 = vmatprep.subr.mxu0 0.0
          %343 = vmatpush1.xpose.msra.mxu0 0.0
          %344 = vmatprep.subr.mxu0 0.0
          %345 = vmatpush1.xpose.msra.mxu0 0.0
          %346 = vmatprep.subr.mxu0 0.0
          %347 = vmatpush1.xpose.msra.mxu0 0.0
          %348 = vmatprep.subr.mxu0 0.0
          %349 = vmatpush1.xpose.msra.mxu0 0.0
          %350 = vmatprep.subr.mxu0 0.0
          %351 = vmatpush1.xpose.msra.mxu0 0.0
          %352 = vmatprep.subr.mxu0 0.0
          %353 = vmatpush1.xpose.msra.mxu0 0.0
          %354 = vmatprep.subr.mxu0 0.0
          %355 = vmatpush1.xpose.msra.mxu0 %v321
          %356 = vmatprep.subr.mxu0 0.0
          %357 = vmatpush2.xpose.msra.mxu0 0.0
          %358 = vmatprep.subr.mxu0 0.0
          %359 = vmatpush2.xpose.msra.mxu0 0.0
          %360 = vmatprep.subr.mxu0 0.0
          %361 = vmatpush2.xpose.msra.mxu0 0.0
          %362 = vmatprep.subr.mxu0 0.0
          %363 = vmatpush2.xpose.msra.mxu0 0.0
          %364 = vmatprep.subr.mxu0 0.0
          %365 = vmatpush2.xpose.msra.mxu0 0.0
          %366 = vmatprep.subr.mxu0 0.0
          %367 = vmatpush2.xpose.msra.mxu0 0.0
          %368 = vmatprep.subr.mxu0 0.0
          %369 = vmatpush2.xpose.msra.mxu0 0.0
          %370 = vmatprep.subr.mxu0 0.0
          %371 = vmatpush2.xpose.msra.mxu0 0.0
          %372 = vmatprep.subr.mxu0 0.0
          %373 = vmatpush2.xpose.msra.mxu0 0.0
          %374 = vmatprep.subr.mxu0 0.0
          %375 = vmatpush2.xpose.msra.mxu0 0.0
          %376 = vmatprep.subr.mxu0 0.0
          %377 = vmatpush2.xpose.msra.mxu0 0.0
          %378 = vmatprep.subr.mxu0 0.0
          %379 = vmatpush2.xpose.msra.mxu0 0.0
          %380 = vmatprep.subr.mxu0 0.0
          %381 = vmatpush2.xpose.msra.mxu0 0.0
          %382 = vmatprep.subr.mxu0 0.0
          %383 = vmatpush2.xpose.msra.mxu0 0.0
          %384 = vmatprep.subr.mxu0 0.0
          %385 = vmatpush2.xpose.msra.mxu0 0.0
          %386 = vmatprep.subr.mxu0 0.0
          %387 = vmatpush2.xpose.msra.mxu0 0.0
          %388 = vmatprep.mubr.f32.mxu0 0.0
          %389 = vmatmul.mubr.f32.gmra.mxu0 %v323
          %v390 = vpop.f32.mrf.mxu0
          %v391 = vadd.f32 0.0, %v390
          %v392 = vpop.f32.mrf.mxu0
          %393 = vdwg.mxu0
          %v394 = vlaneseq
          %v395 = vshrl.u32 %v394, 7
          %v396 = vstv %s303
          %v397 = vadd.s32 %v396, %v395
          %v398 = vlaneseq
          %v399 = vand.u32 %v398, 127
          %v400 = vstv %s304
          %v401 = vadd.s32 %v400, %v399
          %vm402 = vcmp.gt.s32.totalorder %v401, %v397
          %v403 = vsel %vm402, -1e+30, %v391
          %v404 = vld [vmem:[#allocation2] sm:$0xff]
          %vm405 = vcmask 64512
          %v406 = vsel %vm405, %v403, -inf
          %407 = vmax.xlane.f32.xlu0 %v406
          %v408 = vpop.xlane.xlu0 %407
          %v409 = vmax.f32 %v404, %v408
          %v410 = vsub.f32 %v404, %v409
          %v411 = vmul.f32 %v410, 1.442695
          %v412 = vpow.pop %v411
          %414 = vset.pattern.permute.xlu0 0
          %415 = vperm.xlu0 %414, %v409
          %v416 = vpop.permute.xlu0 %415
          %v418 = vsub.f32 %v403, %v416
          %v419 = vmul.f32 %v418, 1.442695
          %v420 = vpow.pop %v419
          %v421 = vld [vmem:[#allocation3] sm:$0xff]
          %v422 = vmul.f32 %v412, %v421
          %v423 = vsel %vm405, %v420, 0.0
          %424 = vadd.xlane.f32.xlu0 %v423
          %v425 = vpop.xlane.xlu0 %424
          %v426 = vadd.f32 %v422, %v425
          %vm427 = vcmask 7168
          %428 = vst.msk [vmem:[#allocation3] sm:$0xff] %vm427, %v426
          %v429 = vld [vmem:[#allocation4] sm:$0xff]
          %431 = vset.pattern.permute.xlu0 0
          %432 = vperm.xlu0 %431, %v412
          %v433 = vpop.permute.xlu0 %432
          %v435 = vmul.f32 %v433, %v429
          %v437 = vsel %vm405, %v420, 0
          %439 = vmatprep.subr.mxu0 0.0
          %440 = vmatpush1.msra.mxu0 0.0
          %441 = vmatprep.subr.mxu0 0.0
          %442 = vmatpush1.msra.mxu0 0.0
          %443 = vmatprep.subr.mxu0 0.0
          %444 = vmatpush1.msra.mxu0 0.0
          %445 = vmatprep.subr.mxu0 0.0
          %446 = vmatpush1.msra.mxu0 0.0
          %447 = vmatprep.subr.mxu0 0.0
          %448 = vmatpush1.msra.mxu0 0.0
          %449 = vmatprep.subr.mxu0 0.0
          %450 = vmatpush1.msra.mxu0 0.0
          %451 = vmatprep.subr.mxu0 0.0
          %452 = vmatpush1.msra.mxu0 0.0
          %453 = vmatprep.subr.mxu0 0.0
          %454 = vmatpush1.msra.mxu0 0.0
          %455 = vmatprep.subr.mxu0 0.0
          %456 = vmatpush1.msra.mxu0 0.0
          %457 = vmatprep.subr.mxu0 0.0
          %458 = vmatpush1.msra.mxu0 0.0
          %459 = vmatprep.subr.mxu0 0.0
          %460 = vmatpush1.msra.mxu0 0.0
          %461 = vmatprep.subr.mxu0 0.0
          %462 = vmatpush1.msra.mxu0 0.0
          %463 = vmatprep.subr.mxu0 0.0
          %464 = vmatpush1.msra.mxu0 0.0
          %465 = vmatprep.subr.mxu0 0.0
          %466 = vmatpush1.msra.mxu0 0.0
          %467 = vmatprep.subr.mxu0 0.0
          %468 = vmatpush1.msra.mxu0 0.0
          %469 = vmatprep.subr.mxu0 0.0
          %470 = vmatpush1.msra.mxu0 %v322
          %471 = vmatprep.subr.mxu0 0.0
          %472 = vmatpush2.msra.mxu0 0.0
          %473 = vmatprep.subr.mxu0 0.0
          %474 = vmatpush2.msra.mxu0 0.0
          %475 = vmatprep.subr.mxu0 0.0
          %476 = vmatpush2.msra.mxu0 0.0
          %477 = vmatprep.subr.mxu0 0.0
          %478 = vmatpush2.msra.mxu0 0.0
          %479 = vmatprep.subr.mxu0 0.0
          %480 = vmatpush2.msra.mxu0 0.0
          %481 = vmatprep.subr.mxu0 0.0
          %482 = vmatpush2.msra.mxu0 0.0
          %483 = vmatprep.subr.mxu0 0.0
          %484 = vmatpush2.msra.mxu0 0.0
          %485 = vmatprep.subr.mxu0 0.0
          %486 = vmatpush2.msra.mxu0 0.0
          %487 = vmatprep.subr.mxu0 0.0
          %488 = vmatpush2.msra.mxu0 0.0
          %489 = vmatprep.subr.mxu0 0.0
          %490 = vmatpush2.msra.mxu0 0.0
          %491 = vmatprep.subr.mxu0 0.0
          %492 = vmatpush2.msra.mxu0 0.0
          %493 = vmatprep.subr.mxu0 0.0
          %494 = vmatpush2.msra.mxu0 0.0
          %495 = vmatprep.subr.mxu0 0.0
          %496 = vmatpush2.msra.mxu0 0.0
          %497 = vmatprep.subr.mxu0 0.0
          %498 = vmatpush2.msra.mxu0 0.0
          %499 = vmatprep.subr.mxu0 0.0
          %500 = vmatpush2.msra.mxu0 0.0
          %501 = vmatprep.subr.mxu0 0.0
          %502 = vmatpush2.msra.mxu0 0.0
          %503 = vmatprep.mubr.f32.mxu0 0.0
          %504 = vmatmul.mubr.f32.gmra.mxu0 %v437
          %v505 = vpop.f32.mrf.mxu0
          %v506 = vadd.f32 0.0, %v505
          %v507 = vpop.f32.mrf.mxu0
          %508 = vdwg.mxu0
          %v509 = vadd.f32 %v435, %v506
          %510 = vst [vmem:[#allocation4] sm:$0xff] %v509
          %511 = vst.msk [vmem:[#allocation2] sm:$0xff] %vm427, %v409
        $region52: #{tpu_custom_call.1} parent=31 // pred_fallthru
          _
        %p512 = scmp.le.s32.totalorder %s306, %s303
        // Predicated region
        $region53: #{tpu_custom_call.1} parent=31 // pred_check
          %p513 = pneg %p512
        $region54: #{tpu_custom_call.1} parent=31 // pred_check_branch
          %515 = sbr.rel (%p513) target = $region56
        $region55: #{tpu_custom_call.1} parent=31 // pred_region
          %v516 = vld [vmem:[%s257] sm:$0xff]
          %v517 = vld [vmem:[%s266] sm:$0xff]
          %v518 = vld [vmem:[%s248] sm:$0xff]
          %519 = vmatprep.subr.mxu0 0.0
          %520 = vmatpush1.xpose.msra.mxu0 0.0
          %521 = vmatprep.subr.mxu0 0.0
          %522 = vmatpush1.xpose.msra.mxu0 0.0
          %523 = vmatprep.subr.mxu0 0.0
          %524 = vmatpush1.xpose.msra.mxu0 0.0
          %525 = vmatprep.subr.mxu0 0.0
          %526 = vmatpush1.xpose.msra.mxu0 0.0
          %527 = vmatprep.subr.mxu0 0.0
          %528 = vmatpush1.xpose.msra.mxu0 0.0
          %529 = vmatprep.subr.mxu0 0.0
          %530 = vmatpush1.xpose.msra.mxu0 0.0
          %531 = vmatprep.subr.mxu0 0.0
          %532 = vmatpush1.xpose.msra.mxu0 0.0
          %533 = vmatprep.subr.mxu0 0.0
          %534 = vmatpush1.xpose.msra.mxu0 0.0
          %535 = vmatprep.subr.mxu0 0.0
          %536 = vmatpush1.xpose.msra.mxu0 0.0
          %537 = vmatprep.subr.mxu0 0.0
          %538 = vmatpush1.xpose.msra.mxu0 0.0
          %539 = vmatprep.subr.mxu0 0.0
          %540 = vmatpush1.xpose.msra.mxu0 0.0
          %541 = vmatprep.subr.mxu0 0.0
          %542 = vmatpush1.xpose.msra.mxu0 0.0
          %543 = vmatprep.subr.mxu0 0.0
          %544 = vmatpush1.xpose.msra.mxu0 0.0
          %545 = vmatprep.subr.mxu0 0.0
          %546 = vmatpush1.xpose.msra.mxu0 0.0
          %547 = vmatprep.subr.mxu0 0.0
          %548 = vmatpush1.xpose.msra.mxu0 0.0
          %549 = vmatprep.subr.mxu0 0.0
          %550 = vmatpush1.xpose.msra.mxu0 %v516
          %551 = vmatprep.subr.mxu0 0.0
          %552 = vmatpush2.xpose.msra.mxu0 0.0
          %553 = vmatprep.subr.mxu0 0.0
          %554 = vmatpush2.xpose.msra.mxu0 0.0
          %555 = vmatprep.subr.mxu0 0.0
          %556 = vmatpush2.xpose.msra.mxu0 0.0
          %557 = vmatprep.subr.mxu0 0.0
          %558 = vmatpush2.xpose.msra.mxu0 0.0
          %559 = vmatprep.subr.mxu0 0.0
          %560 = vmatpush2.xpose.msra.mxu0 0.0
          %561 = vmatprep.subr.mxu0 0.0
          %562 = vmatpush2.xpose.msra.mxu0 0.0
          %563 = vmatprep.subr.mxu0 0.0
          %564 = vmatpush2.xpose.msra.mxu0 0.0
          %565 = vmatprep.subr.mxu0 0.0
          %566 = vmatpush2.xpose.msra.mxu0 0.0
          %567 = vmatprep.subr.mxu0 0.0
          %568 = vmatpush2.xpose.msra.mxu0 0.0
          %569 = vmatprep.subr.mxu0 0.0
          %570 = vmatpush2.xpose.msra.mxu0 0.0
          %571 = vmatprep.subr.mxu0 0.0
          %572 = vmatpush2.xpose.msra.mxu0 0.0
          %573 = vmatprep.subr.mxu0 0.0
          %574 = vmatpush2.xpose.msra.mxu0 0.0
          %575 = vmatprep.subr.mxu0 0.0
          %576 = vmatpush2.xpose.msra.mxu0 0.0
          %577 = vmatprep.subr.mxu0 0.0
          %578 = vmatpush2.xpose.msra.mxu0 0.0
          %579 = vmatprep.subr.mxu0 0.0
          %580 = vmatpush2.xpose.msra.mxu0 0.0
          %581 = vmatprep.subr.mxu0 0.0
          %582 = vmatpush2.xpose.msra.mxu0 0.0
          %583 = vmatprep.mubr.f32.mxu0 0.0
          %584 = vmatmul.mubr.f32.gmra.mxu0 %v518
          %v585 = vpop.f32.mrf.mxu0
          %v586 = vadd.f32 0.0, %v585
          %v587 = vpop.f32.mrf.mxu0
          %588 = vdwg.mxu0
          %v589 = vld [vmem:[#allocation2] sm:$0xff]
          %vm590 = vcmask 64512
          %v591 = vsel %vm590, %v586, -inf
          %592 = vmax.xlane.f32.xlu0 %v591
          %v593 = vpop.xlane.xlu0 %592
          %v594 = vmax.f32 %v589, %v593
          %v595 = vsub.f32 %v589, %v594
          %v596 = vmul.f32 %v595, 1.442695
          %v597 = vpow.pop %v596
          %599 = vset.pattern.permute.xlu0 0
          %600 = vperm.xlu0 %599, %v594
          %v601 = vpop.permute.xlu0 %600
          %v603 = vsub.f32 %v586, %v601
          %v604 = vmul.f32 %v603, 1.442695
          %v605 = vpow.pop %v604
          %v606 = vld [vmem:[#allocation3] sm:$0xff]
          %v607 = vmul.f32 %v597, %v606
          %v608 = vsel %vm590, %v605, 0.0
          %609 = vadd.xlane.f32.xlu0 %v608
          %v610 = vpop.xlane.xlu0 %609
          %v611 = vadd.f32 %v607, %v610
          %vm612 = vcmask 7168
          %613 = vst.msk [vmem:[#allocation3] sm:$0xff] %vm612, %v611
          %v614 = vld [vmem:[#allocation4] sm:$0xff]
          %616 = vset.pattern.permute.xlu0 0
          %617 = vperm.xlu0 %616, %v597
          %v618 = vpop.permute.xlu0 %617
          %v620 = vmul.f32 %v618, %v614
          %v622 = vsel %vm590, %v605, 0
          %624 = vmatprep.subr.mxu0 0.0
          %625 = vmatpush1.msra.mxu0 0.0
          %626 = vmatprep.subr.mxu0 0.0
          %627 = vmatpush1.msra.mxu0 0.0
          %628 = vmatprep.subr.mxu0 0.0
          %629 = vmatpush1.msra.mxu0 0.0
          %630 = vmatprep.subr.mxu0 0.0
          %631 = vmatpush1.msra.mxu0 0.0
          %632 = vmatprep.subr.mxu0 0.0
          %633 = vmatpush1.msra.mxu0 0.0
          %634 = vmatprep.subr.mxu0 0.0
          %635 = vmatpush1.msra.mxu0 0.0
          %636 = vmatprep.subr.mxu0 0.0
          %637 = vmatpush1.msra.mxu0 0.0
          %638 = vmatprep.subr.mxu0 0.0
          %639 = vmatpush1.msra.mxu0 0.0
          %640 = vmatprep.subr.mxu0 0.0
          %641 = vmatpush1.msra.mxu0 0.0
          %642 = vmatprep.subr.mxu0 0.0
          %643 = vmatpush1.msra.mxu0 0.0
          %644 = vmatprep.subr.mxu0 0.0
          %645 = vmatpush1.msra.mxu0 0.0
          %646 = vmatprep.subr.mxu0 0.0
          %647 = vmatpush1.msra.mxu0 0.0
          %648 = vmatprep.subr.mxu0 0.0
          %649 = vmatpush1.msra.mxu0 0.0
          %650 = vmatprep.subr.mxu0 0.0
          %651 = vmatpush1.msra.mxu0 0.0
          %652 = vmatprep.subr.mxu0 0.0
          %653 = vmatpush1.msra.mxu0 0.0
          %654 = vmatprep.subr.mxu0 0.0
          %655 = vmatpush1.msra.mxu0 %v517
          %656 = vmatprep.subr.mxu0 0.0
          %657 = vmatpush2.msra.mxu0 0.0
          %658 = vmatprep.subr.mxu0 0.0
          %659 = vmatpush2.msra.mxu0 0.0
          %660 = vmatprep.subr.mxu0 0.0
          %661 = vmatpush2.msra.mxu0 0.0
          %662 = vmatprep.subr.mxu0 0.0
          %663 = vmatpush2.msra.mxu0 0.0
          %664 = vmatprep.subr.mxu0 0.0
          %665 = vmatpush2.msra.mxu0 0.0
          %666 = vmatprep.subr.mxu0 0.0
          %667 = vmatpush2.msra.mxu0 0.0
          %668 = vmatprep.subr.mxu0 0.0
          %669 = vmatpush2.msra.mxu0 0.0
          %670 = vmatprep.subr.mxu0 0.0
          %671 = vmatpush2.msra.mxu0 0.0
          %672 = vmatprep.subr.mxu0 0.0
          %673 = vmatpush2.msra.mxu0 0.0
          %674 = vmatprep.subr.mxu0 0.0
          %675 = vmatpush2.msra.mxu0 0.0
          %676 = vmatprep.subr.mxu0 0.0
          %677 = vmatpush2.msra.mxu0 0.0
          %678 = vmatprep.subr.mxu0 0.0
          %679 = vmatpush2.msra.mxu0 0.0
          %680 = vmatprep.subr.mxu0 0.0
          %681 = vmatpush2.msra.mxu0 0.0
          %682 = vmatprep.subr.mxu0 0.0
          %683 = vmatpush2.msra.mxu0 0.0
          %684 = vmatprep.subr.mxu0 0.0
          %685 = vmatpush2.msra.mxu0 0.0
          %686 = vmatprep.subr.mxu0 0.0
          %687 = vmatpush2.msra.mxu0 0.0
          %688 = vmatprep.mubr.f32.mxu0 0.0
          %689 = vmatmul.mubr.f32.gmra.mxu0 %v622
          %v690 = vpop.f32.mrf.mxu0
          %v691 = vadd.f32 0.0, %v690
          %v692 = vpop.f32.mrf.mxu0
          %693 = vdwg.mxu0
          %v694 = vadd.f32 %v620, %v691
          %695 = vst [vmem:[#allocation4] sm:$0xff] %v694
          %696 = vst.msk [vmem:[#allocation2] sm:$0xff] %vm612, %v594
        $region56: #{tpu_custom_call.1} parent=31 // pred_fallthru
          _
        // Predicated region
        $region57: #{tpu_custom_call.1} parent=31 // pred_check
          %p697 = pneg %p307
        $region58: #{tpu_custom_call.1} parent=31 // pred_check_branch
          %699 = sbr.rel (%p697) target = $region60
        $region59: #{tpu_custom_call.1} parent=31 // pred_region
          %v700 = vld [vmem:[#allocation3] sm:$0xff]
          %v701 = vrcp.pop %v700
          %v702 = vld [vmem:[#allocation4] sm:$0xff]
          %704 = vset.pattern.permute.xlu0 0
          %705 = vperm.xlu0 %704, %v701
          %v706 = vpop.permute.xlu0 %705
          %v708 = vmul.f32 %v702, %v706
          %709 = vst [vmem:[%s298] sm:$0xff] %v708
        $region60: #{tpu_custom_call.1} parent=31 // pred_fallthru
          _
        %s710 = sand.u32 %s144, 1
        %s711 = scalar_lea.sflag [#allocation7], %s710
        %s712 = sand.u32 %s144, 1
        %s713 = smul.addr %s712, 8
        %s714 = scalar_lea.vmem [#allocation11], %s713
        // Predicated region
        $region61: #{tpu_custom_call.1} parent=31 // pred_check
          %p715 = pneg %p154
        $region62: #{tpu_custom_call.1} parent=31 // pred_check_branch
          %717 = sbr.rel (%p715) target = $region64
        $region63: #{tpu_custom_call.1} parent=31 // pred_region
          %s719 = ssub.s32 128, 128
          %720 = vsyncadd %s711, %s719
          %s721 = sadd.s32 %s29, %s28
          %s722 = smul.addr %s721, 128
          %s723 = scalar_lea.hbm %s3, %s722
          %s725 = sshll.u32 %s714, 4
          %s726 = int_to_ptr.vmem [resolvable:$true] %s725
          %728 = dma.vmem_to_hbm [thread:$0]  %s726, 128, %s723, %s711
        $region64: #{tpu_custom_call.1} parent=31 // pred_fallthru
          _
      $region32: #{tpu_custom_call.1} parent=5 // pred_fallthru
        _
      %p729 = scmp.le.s32.totalorder 2, %s18
      // Predicated region
      $region65: #{tpu_custom_call.1} parent=5 // pred_check
        %p730 = pneg %p729
      $region66: #{tpu_custom_call.1} parent=5 // pred_check_branch
        %732 = sbr.rel (%p730) target = $region68
      $region67: #{tpu_custom_call.1} parent=5 // pred_region
        %s733 = ssub.s32 %s18, 2
        // Predicated region
        $region69: #{tpu_custom_call.1} parent=67 // pred_check
          %p734 = pneg %p160
        $region70: #{tpu_custom_call.1} parent=67 // pred_check_branch
          %736 = sbr.rel (%p734) target = $region72
        $region71: #{tpu_custom_call.1} parent=67 // pred_region
          %s737 = sand.u32 %s145, 1
          %s738 = scalar_lea.sflag [#allocation7], %s737
          %s739 = sand.u32 %s145, 1
          %s740 = smul.addr %s739, 8
          %s741 = scalar_lea.vmem [#allocation11], %s740
          %742 = dma.done %s738, 128
        $region72: #{tpu_custom_call.1} parent=67 // pred_fallthru
          _
      $region68: #{tpu_custom_call.1} parent=5 // pred_fallthru
        _
    $region6: #{tpu_custom_call.1} parent=1 // loop_footer
      %s22 = sadd.s32 1, %s18
    $region7: #{tpu_custom_call.1} parent=1 // loop_footer_branch
      %17 = sbr.rel target = $region3
    $region8: #{tpu_custom_call.1} parent=1 // loop_exit
      _
    %743 = vsyncpa [#allocation6], 1
    %s744 = scalar_lea.sflag [#allocation6], 1
    %745 = vsyncpa %s744, 1
    %746 = vsyncpa [#allocation9], 1
    %s747 = scalar_lea.sflag [#allocation9], 1
    %748 = vsyncpa %s747, 1
    %749 = vsyncpa [#allocation7], 1
    %s750 = scalar_lea.sflag [#allocation7], 1
    %751 = vsyncpa %s750, 1

</llo_original>
